<compile_context>
chip_gen: v7x
topology: tpu7x:2x2x1
jax: 0.10.0
libtpu: 0.0.40
codegen_flags: <defaults>
</compile_context>

<pallas_src>
import functools

import jax
import jax.numpy as jnp
from jax.experimental import pallas as pl
from jax.experimental.pallas import tpu as pltpu


def _actor_kernel(x_ref, w1_ref, b1_ref, w2_ref, b2_ref, w3_ref, b3_ref,
                  o_ref, *, bound):
    # layer 1: (TB, S) @ (S, H) -> fp32, bias + ReLU in fp32
    h1 = jnp.dot(x_ref[...], w1_ref[...], preferred_element_type=jnp.float32)
    h1 = jnp.maximum(h1 + b1_ref[...], 0.0)
    # layer 2: (TB, H) @ (H, H) -> fp32 (operands bf16 on the MXU)
    h2 = jnp.dot(h1.astype(w2_ref.dtype), w2_ref[...],
                 preferred_element_type=jnp.float32)
    h2 = jnp.maximum(h2 + b2_ref[...], 0.0)
    # layer 3: N=1 "matmul" as VPU mul + XLU lane reduction (w3 is (1, H) fp32)
    out = jnp.sum(h2 * w3_ref[...], axis=-1, keepdims=True)
    out = out + b3_ref[0, 0]                     # scalar bias from SMEM
    if bound is not None:
        out = jnp.clip(out, bound[0], bound[1])
    o_ref[...] = out.astype(o_ref.dtype)


def _round_up(x, m):
    return ((x + m - 1) // m) * m


def ddpg_actor_forward(state, params, bound=None, *,
                       compute_dtype=jnp.bfloat16, tile_b=256):
    """Fused forward pass of DDPGActor.

    state:  (B, num_state) float32
    params: dict with w1 (S,H), b1 (1,H), w2 (H,H), b2 (1,H), w3 (1,H), b3 (1,1)
    bound:  optional (min, max) tuple of static python floats
    """
    w1 = params["w1"].astype(compute_dtype)
    w2 = params["w2"].astype(compute_dtype)
    b1 = params["b1"].astype(jnp.float32)
    b2 = params["b2"].astype(jnp.float32)
    w3 = params["w3"].astype(jnp.float32)          # (1, H) row for VPU path
    b3 = params["b3"].astype(jnp.float32)          # (1, 1) scalar -> SMEM

    B, S = state.shape
    H = w1.shape[1]

    # Batch tiling: pad B to a multiple of the tile, grid over tiles.
    TB = min(tile_b, _round_up(B, 8))
    Bp = _round_up(B, TB)
    x = state.astype(compute_dtype)
    if Bp != B:
        x = jnp.pad(x, ((0, Bp - B), (0, 0)))

    const2d = lambda arr: pl.BlockSpec(arr.shape, lambda i: (0, 0))

    kernel = functools.partial(_actor_kernel, bound=bound)
    out = pl.pallas_call(
        kernel,
        out_shape=jax.ShapeDtypeStruct((Bp, 1), jnp.float32),
        grid=(Bp // TB,),
        in_specs=[
            pl.BlockSpec((TB, S), lambda i: (i, 0)),   # state tile
            const2d(w1), const2d(b1),                  # weights stay resident
            const2d(w2), const2d(b2),
            const2d(w3),
            pl.BlockSpec(memory_space=pltpu.MemorySpace.SMEM),  # b3 scalar
        ],
        out_specs=pl.BlockSpec((TB, 1), lambda i: (i, 0)),
        compiler_params=pltpu.CompilerParams(
            dimension_semantics=("parallel",)),
    )(x, w1, b1, w2, b2, w3, b3)

    return out[:B]


def init_params(key, num_state, n_hidden):
    """Deterministic synthetic parameter init (PyTorch-like uniform ranges)."""
    ks = jax.random.split(key, 6)

    def uni(k, shape, fan_in):
        lim = 1.0 / jnp.sqrt(fan_in)
        return jax.random.uniform(k, shape, jnp.float32, -lim, lim)

    return {
        "w1": uni(ks[0], (num_state, n_hidden), num_state),
        "b1": uni(ks[1], (1, n_hidden), num_state),
        "w2": uni(ks[2], (n_hidden, n_hidden), n_hidden),
        "b2": uni(ks[3], (1, n_hidden), n_hidden),
        "w3": uni(ks[4], (1, n_hidden), n_hidden),   # stored as a (1, H) row
        "b3": uni(ks[5], (1, 1), n_hidden),
    }


def _reference(state, params, bound, compute_dtype):
    """Pure-JAX reference mirroring the kernel's compute dtypes."""
    x = state.astype(compute_dtype)
    w1 = params["w1"].astype(compute_dtype)
    w2 = params["w2"].astype(compute_dtype)
    h1 = jnp.dot(x, w1, preferred_element_type=jnp.float32) + params["b1"]
    h1 = jnp.maximum(h1, 0.0)
    h2 = jnp.dot(h1.astype(compute_dtype), w2,
                 preferred_element_type=jnp.float32) + params["b2"]
    h2 = jnp.maximum(h2, 0.0)
    out = jnp.sum(h2 * params["w3"], axis=-1, keepdims=True) + params["b3"]
    if bound is not None:
        out = jnp.clip(out, bound[0], bound[1])
    return out


if __name__ == "__main__":
    key = jax.random.PRNGKey(0)
    k_params, k_state = jax.random.split(key)

    B, NUM_STATE, N_HIDDEN = 8, 32, 256
    BOUND = (-2.0, 2.0)

    params = init_params(k_params, NUM_STATE, N_HIDDEN)
    state = jax.random.normal(k_state, (B, NUM_STATE), jnp.float32)

    out = ddpg_actor_forward(state, params, bound=BOUND)
    out = jax.block_until_ready(out)

    ref = _reference(state, params, BOUND, jnp.bfloat16)
    assert out.shape == (B, 1), out.shape
    assert jnp.allclose(out, ref, atol=2e-3, rtol=2e-3), (out, ref)

    print("KERNEL_OK")
</pallas_src>

<mosaic_0001>
module attributes {stable_mosaic.version = 11 : i64} {
  func.func @_actor_kernel(%arg0: i32, %arg1: memref<8x32xbf16, #tpu.memory_space<vmem>>, %arg2: memref<32x256xbf16, #tpu.memory_space<vmem>>, %arg3: memref<1x256xf32, #tpu.memory_space<vmem>>, %arg4: memref<256x256xbf16, #tpu.memory_space<vmem>>, %arg5: memref<1x256xf32, #tpu.memory_space<vmem>>, %arg6: memref<1x256xf32, #tpu.memory_space<vmem>>, %arg7: memref<1x1xf32, #tpu.memory_space<smem>>, %arg8: memref<8x1xf32, #tpu.memory_space<vmem>>) attributes {dimension_semantics = [#tpu.dimension_semantics<parallel>], iteration_bounds = array<i64: 1>, scalar_prefetch = 0 : i64, scratch_operands = 0 : i64, tpu.core_type = #tpu.core_type<tc>, window_params = [{transform_indices = @transform_0, window_bounds = array<i64: 8, 32>}, {pipeline_mode = #tpu.pipeline_mode<synchronous>, transform_indices = @transform_1, window_bounds = array<i64: 32, 256>}, {pipeline_mode = #tpu.pipeline_mode<synchronous>, transform_indices = @transform_2, window_bounds = array<i64: 1, 256>}, {pipeline_mode = #tpu.pipeline_mode<synchronous>, transform_indices = @transform_3, window_bounds = array<i64: 256, 256>}, {pipeline_mode = #tpu.pipeline_mode<synchronous>, transform_indices = @transform_4, window_bounds = array<i64: 1, 256>}, {pipeline_mode = #tpu.pipeline_mode<synchronous>, transform_indices = @transform_5, window_bounds = array<i64: 1, 256>}, {transform_indices = @transform_6, window_bounds = array<i64: 1, 1>}, {transform_indices = @transform_7, window_bounds = array<i64: 8, 1>}]} {
    %c0 = arith.constant 0 : index
    %c0_0 = arith.constant 0 : index
    %0 = vector.load %arg1[%c0, %c0_0] : memref<8x32xbf16, #tpu.memory_space<vmem>>, vector<8x32xbf16>
    %c0_1 = arith.constant 0 : index
    %c0_2 = arith.constant 0 : index
    %1 = vector.load %arg2[%c0_1, %c0_2] : memref<32x256xbf16, #tpu.memory_space<vmem>>, vector<32x256xbf16>
    %cst = arith.constant dense<0.000000e+00> : vector<8x256xf32>
    %2 = tpu.matmul %0, %1, %cst {dimension_numbers = #tpu.dot_dimension_numbers<[1], [0], [0], [1], [0, 0, 1, 1], [], []>} : vector<8x32xbf16>, vector<32x256xbf16>, vector<8x256xf32> -> vector<8x256xf32>
    %c0_3 = arith.constant 0 : index
    %c0_4 = arith.constant 0 : index
    %3 = vector.load %arg3[%c0_3, %c0_4] : memref<1x256xf32, #tpu.memory_space<vmem>>, vector<1x256xf32>
    %4 = vector.broadcast %3 : vector<1x256xf32> to vector<8x256xf32>
    %5 = arith.addf %2, %4 : vector<8x256xf32>
    %cst_5 = arith.constant 0.000000e+00 : f32
    %6 = vector.broadcast %cst_5 : f32 to vector<8x256xf32>
    %7 = arith.maximumf %5, %6 : vector<8x256xf32>
    %8 = arith.truncf %7 : vector<8x256xf32> to vector<8x256xbf16>
    %c0_6 = arith.constant 0 : index
    %c0_7 = arith.constant 0 : index
    %9 = vector.load %arg4[%c0_6, %c0_7] : memref<256x256xbf16, #tpu.memory_space<vmem>>, vector<256x256xbf16>
    %cst_8 = arith.constant dense<0.000000e+00> : vector<8x256xf32>
    %10 = tpu.matmul %8, %9, %cst_8 {dimension_numbers = #tpu.dot_dimension_numbers<[1], [0], [0], [1], [0, 0, 1, 1], [], []>} : vector<8x256xbf16>, vector<256x256xbf16>, vector<8x256xf32> -> vector<8x256xf32>
    %c0_9 = arith.constant 0 : index
    %c0_10 = arith.constant 0 : index
    %11 = vector.load %arg5[%c0_9, %c0_10] : memref<1x256xf32, #tpu.memory_space<vmem>>, vector<1x256xf32>
    %12 = vector.broadcast %11 : vector<1x256xf32> to vector<8x256xf32>
    %13 = arith.addf %10, %12 : vector<8x256xf32>
    %cst_11 = arith.constant 0.000000e+00 : f32
    %14 = vector.broadcast %cst_11 : f32 to vector<8x256xf32>
    %15 = arith.maximumf %13, %14 : vector<8x256xf32>
    %c0_12 = arith.constant 0 : index
    %c0_13 = arith.constant 0 : index
    %16 = vector.load %arg6[%c0_12, %c0_13] : memref<1x256xf32, #tpu.memory_space<vmem>>, vector<1x256xf32>
    %17 = vector.broadcast %16 : vector<1x256xf32> to vector<8x256xf32>
    %18 = arith.mulf %15, %17 : vector<8x256xf32>
    %cst_14 = arith.constant dense<0.000000e+00> : vector<8xf32>
    %19 = vector.multi_reduction <add>, %18, %cst_14 [1] : vector<8x256xf32> to vector<8xf32>
    %20 = vector.shape_cast %19 : vector<8xf32> to vector<8x1xf32>
    %c0_15 = arith.constant 0 : index
    %c0_16 = arith.constant 0 : index
    %21 = memref.load %arg7[%c0_15, %c0_16] : memref<1x1xf32, #tpu.memory_space<smem>>
    %22 = vector.broadcast %21 : f32 to vector<8x1xf32>
    %23 = arith.addf %20, %22 : vector<8x1xf32>
    %cst_17 = arith.constant -2.000000e+00 : f32
    %cst_18 = arith.constant 2.000000e+00 : f32
    %24 = vector.broadcast %cst_17 : f32 to vector<8x1xf32>
    %25 = arith.maximumf %24, %23 : vector<8x1xf32>
    %26 = vector.broadcast %cst_18 : f32 to vector<8x1xf32>
    %27 = arith.minimumf %26, %25 : vector<8x1xf32>
    %c0_19 = arith.constant 0 : index
    %c0_20 = arith.constant 0 : index
    %28 = vector.load %arg8[%c0_19, %c0_20] : memref<8x1xf32, #tpu.memory_space<vmem>>, vector<8x1xf32>
    tpu.vector_store %arg8[%c0_19, %c0_20], %27 {strides = array<i32>} : memref<8x1xf32, #tpu.memory_space<vmem>>, vector<8x1xf32>,
    return
  }
  func.func @transform_0(%arg0: i32) -> (i32, i32) {
    %c0_i32 = arith.constant 0 : i32
    %c0_i32_0 = arith.constant 0 : i32
    return %arg0, %c0_i32 : i32, i32
  }
  func.func @transform_1(%arg0: i32) -> (i32, i32) {
    %c0_i32 = arith.constant 0 : i32
    %c0_i32_0 = arith.constant 0 : i32
    %c0_i32_1 = arith.constant 0 : i32
    return %c0_i32, %c0_i32_0 : i32, i32
  }
  func.func @transform_2(%arg0: i32) -> (i32, i32) {
    %c0_i32 = arith.constant 0 : i32
    %c0_i32_0 = arith.constant 0 : i32
    %c0_i32_1 = arith.constant 0 : i32
    return %c0_i32, %c0_i32_0 : i32, i32
  }
  func.func @transform_3(%arg0: i32) -> (i32, i32) {
    %c0_i32 = arith.constant 0 : i32
    %c0_i32_0 = arith.constant 0 : i32
    %c0_i32_1 = arith.constant 0 : i32
    return %c0_i32, %c0_i32_0 : i32, i32
  }
  func.func @transform_4(%arg0: i32) -> (i32, i32) {
    %c0_i32 = arith.constant 0 : i32
    %c0_i32_0 = arith.constant 0 : i32
    %c0_i32_1 = arith.constant 0 : i32
    return %c0_i32, %c0_i32_0 : i32, i32
  }
  func.func @transform_5(%arg0: i32) -> (i32, i32) {
    %c0_i32 = arith.constant 0 : i32
    %c0_i32_0 = arith.constant 0 : i32
    %c0_i32_1 = arith.constant 0 : i32
    return %c0_i32, %c0_i32_0 : i32, i32
  }
  func.func @transform_6(%arg0: i32) -> (i32, i32) {
    %c0_i32 = arith.constant 0 : i32
    %c0_i32_0 = arith.constant 0 : i32
    %c0_i32_1 = arith.constant 0 : i32
    return %c0_i32, %c0_i32_0 : i32, i32
  }
  func.func @transform_7(%arg0: i32) -> (i32, i32) {
    %c0_i32 = arith.constant 0 : i32
    %c0_i32_0 = arith.constant 0 : i32
    return %arg0, %c0_i32 : i32, i32
  }
}

</mosaic_0001>

<llo_original>
// kernel: tpu_custom_call.1
$region0: #{tpu_custom_call.1}
  #allocation0 [shape = 'u32[]', space=smem, size = 0x4, offset = 0x4, fixed_abs, tag = 'smem constant byte address 0x4 - core index']
  #allocation1 [shape = 'u32[144,128]{1,0:T(1,128)}', space=vmem, size = 0x12000, scoped, tag = 'internal scratch']
  #allocation2 [shape = 'f32[1,1]{1,0:T(1,128)S(6)}', space=smem, size = 0x200, scoped, tag = 'scoped memory for tpu_custom_call.1']
  %s0 = inlined_call_operand.hbm [shape: bf16[8,32], index: 0, kind: input, shape index: {}]
  %s1 = inlined_call_operand.hbm [shape: bf16[32,256], index: 1, kind: input, shape index: {}]
  %s2 = inlined_call_operand.vmem [shape: f32[1,256], index: 2, kind: input, shape index: {}]
  %s3 = inlined_call_operand.hbm [shape: bf16[256,256], index: 3, kind: input, shape index: {}]
  %s4 = inlined_call_operand.vmem [shape: f32[1,256], index: 4, kind: input, shape index: {}]
  %s5 = inlined_call_operand.vmem [shape: f32[1,256], index: 5, kind: input, shape index: {}]
  %s6 = inlined_call_operand.<no memory space> [shape: f32[1,1], index: 6, kind: input, shape index: {}]
  %s7 = inlined_call_operand.vmem [shape: f32[8,1], index: 7, kind: output, shape index: {}]
  %s8 = sld [smem:[#allocation0]]
  $region50: #{tpu_custom_call.1} parent=0
    _
  %s10 = ssub.s32 1, %s8
  %s11 = scalar_select 0, %s10, %s8
  %12 = sst [smem:[#allocation2]] %s6
  $region1: #{tpu_custom_call.1} parent=0
    #allocation3 [shape = 'u8[2048]{0}', space=vmem, size = 0x800, scoped, tag = 'input window, operand 0, single buffered']
    #allocation4 [shape = 's32[1]{0}', space=sflag, size = 0x4, scoped, tag = 'scoped memory for tpu_custom_call.1']
    #allocation5 [shape = 'u8[16384]{0}', space=vmem, size = 0x4000, scoped, tag = 'input window, operand 1, single buffered']
    #allocation6 [shape = 's32[1]{0}', space=sflag, size = 0x4, scoped, tag = 'scoped memory for tpu_custom_call.1']
    #allocation7 [shape = 'u8[131072]{0}', space=vmem, size = 0x20000, scoped, tag = 'input window, operand 3, single buffered']
    %13 = vsyncpa [#allocation4], 0
    %14 = vsyncpa [#allocation6], 0
    // Predicated region
    $region2: #{tpu_custom_call.1} parent=1 // pred_check
      _
    $region3: #{tpu_custom_call.1} parent=1 // pred_check_branch
      %16 = sbr.rel (0) target = $region5
    $region4: #{tpu_custom_call.1} parent=1 // pred_region
      %s18 = ssub.s32 64, 64
      %19 = vsyncadd [#allocation4], %s18
      %s21 = sshll.u32 [#allocation3], 4
      %s22 = int_to_ptr.vmem [resolvable:$true] %s21
      %24 = dma.hbm_to_vmem [thread:$0]  %s0, 64, %s22, [#allocation4]
    $region5: #{tpu_custom_call.1} parent=1 // pred_fallthru
      _
    // Predicated region
    $region6: #{tpu_custom_call.1} parent=1 // pred_check
      _
    $region7: #{tpu_custom_call.1} parent=1 // pred_check_branch
      %26 = sbr.rel (0) target = $region9
    $region8: #{tpu_custom_call.1} parent=1 // pred_region
      %s28 = ssub.s32 512, 512
      %29 = vsyncadd [#allocation6], %s28
      %s30 = sshll.u32 [#allocation5], 4
      %s31 = int_to_ptr.vmem [resolvable:$true] %s30
      %36 = dma.hbm_to_vmem [thread:$0]  %s1, 512, %s31, [#allocation6], 128, 128, 8
    $region9: #{tpu_custom_call.1} parent=1 // pred_fallthru
      _
    // Predicated region
    $region10: #{tpu_custom_call.1} parent=1 // pred_check
      _
    $region11: #{tpu_custom_call.1} parent=1 // pred_check_branch
      %38 = sbr.rel (0) target = $region13
    $region12: #{tpu_custom_call.1} parent=1 // pred_region
      _
    $region13: #{tpu_custom_call.1} parent=1 // pred_fallthru
      _
    // Predicated region
    $region14: #{tpu_custom_call.1} parent=1 // pred_check
      _
    $region15: #{tpu_custom_call.1} parent=1 // pred_check_branch
      %40 = sbr.rel (0) target = $region17
    $region16: #{tpu_custom_call.1} parent=1 // pred_region
      %s42 = ssub.s32 4096, 4096
      %43 = vsyncadd [#allocation6], %s42
      %s44 = sshll.u32 [#allocation7], 4
      %s45 = int_to_ptr.vmem [resolvable:$true] %s44
      %50 = dma.hbm_to_vmem [thread:$0]  %s3, 4096, %s45, [#allocation6], 128, 128, 8
    $region17: #{tpu_custom_call.1} parent=1 // pred_fallthru
      _
    // Predicated region
    $region18: #{tpu_custom_call.1} parent=1 // pred_check
      _
    $region19: #{tpu_custom_call.1} parent=1 // pred_check_branch
      %52 = sbr.rel (0) target = $region21
    $region20: #{tpu_custom_call.1} parent=1 // pred_region
      _
    $region21: #{tpu_custom_call.1} parent=1 // pred_fallthru
      _
    // Predicated region
    $region22: #{tpu_custom_call.1} parent=1 // pred_check
      _
    $region23: #{tpu_custom_call.1} parent=1 // pred_check_branch
      %54 = sbr.rel (0) target = $region25
    $region24: #{tpu_custom_call.1} parent=1 // pred_region
      _
    $region25: #{tpu_custom_call.1} parent=1 // pred_fallthru
      _
    // Predicated region
    $region26: #{tpu_custom_call.1} parent=1 // pred_check
      _
    $region27: #{tpu_custom_call.1} parent=1 // pred_check_branch
      %56 = sbr.rel (0) target = $region29
    $region28: #{tpu_custom_call.1} parent=1 // pred_region
      _
    $region29: #{tpu_custom_call.1} parent=1 // pred_fallthru
      _
    // Predicated region
    $region30: #{tpu_custom_call.1} parent=1 // pred_check
      _
    $region31: #{tpu_custom_call.1} parent=1 // pred_check_branch
      %58 = sbr.rel (0) target = $region33
    $region32: #{tpu_custom_call.1} parent=1 // pred_region
      %59 = dma.done [#allocation4], 64
    $region33: #{tpu_custom_call.1} parent=1 // pred_fallthru
      _
    // Predicated region
    $region34: #{tpu_custom_call.1} parent=1 // pred_check
      _
    $region35: #{tpu_custom_call.1} parent=1 // pred_check_branch
      %61 = sbr.rel (0) target = $region37
    $region36: #{tpu_custom_call.1} parent=1 // pred_region
      %62 = dma.done [#allocation6], 512
    $region37: #{tpu_custom_call.1} parent=1 // pred_fallthru
      _
    // Predicated region
    $region38: #{tpu_custom_call.1} parent=1 // pred_check
      _
    $region39: #{tpu_custom_call.1} parent=1 // pred_check_branch
      %64 = sbr.rel (0) target = $region41
    $region40: #{tpu_custom_call.1} parent=1 // pred_region
      %65 = dma.done [#allocation6], 4096
    $region41: #{tpu_custom_call.1} parent=1 // pred_fallthru
      _
    %v67 = vld [vmem:[#allocation3] sm:$0xf]
    %v68 = vld [vmem:[#allocation5] sm:$0xff]
    %v69 = vld [vmem:[#allocation5 + $0x8] sm:$0xff]
    %v70 = vld [vmem:[#allocation5 + $0x10] sm:$0xff]
    %v71 = vld [vmem:[#allocation5 + $0x18] sm:$0xff]
    %v72 = vld [vmem:[%s2] sm:$0x3]
    %v74 = vlaneseq
    %v75 = vshrl.u32 %v74, 7
    %v76 = vsub.s32 0, %v75
    %v77 = vrot.slane %v72, %v76
    %v78 = vlaneseq
    %v79 = vshrl.u32 %v78, 7
    %v80 = vsub.s32 1, %v79
    %v81 = vrot.slane %v72, %v80
    %v88 = vunpack.c.l.b16 %v68
    %v89 = vunpack.c.h.b16 %v68
    %v90 = vunpack.c.l.b16 %v69
    %v91 = vunpack.c.h.b16 %v69
    %v92 = vunpack.c.l.b16 %v70
    %v93 = vunpack.c.h.b16 %v70
    %v94 = vunpack.c.l.b16 %v71
    %v95 = vunpack.c.h.b16 %v71
    %v96 = vpack.c.b16 %v90, %v88
    %v97 = vpack.c.b16 %v91, %v89
    %v98 = vpack.c.b16 %v94, %v92
    %v99 = vpack.c.b16 %v95, %v93
    %vm104 = vcmask 261120
    %v106 = vsel %vm104, %v67, 0
    %108 = vmatprep.subr.bf16.mxu0 %v97
    %109 = vmatpush1.bf16.msra.mxu0 %v96
    %110 = vmatprep.subr.bf16.mxu0 %v99
    %111 = vmatpush1.bf16.msra.mxu0 %v98
    %112 = vmatprep.subr.bf16.mxu0 0
    %113 = vmatpush1.bf16.msra.mxu0 0
    %114 = vmatprep.subr.bf16.mxu0 0
    %115 = vmatpush1.bf16.msra.mxu0 0
    %116 = vmatprep.subr.bf16.mxu0 0
    %117 = vmatpush1.bf16.msra.mxu0 0
    %118 = vmatprep.subr.bf16.mxu0 0
    %119 = vmatpush1.bf16.msra.mxu0 0
    %120 = vmatprep.subr.bf16.mxu0 0
    %121 = vmatpush1.bf16.msra.mxu0 0
    %122 = vmatprep.subr.bf16.mxu0 0
    %123 = vmatpush1.bf16.msra.mxu0 0
    %124 = vmatprep.subr.bf16.mxu0 0
    %125 = vmatpush1.bf16.msra.mxu0 0
    %126 = vmatprep.subr.bf16.mxu0 0
    %127 = vmatpush1.bf16.msra.mxu0 0
    %128 = vmatprep.subr.bf16.mxu0 0
    %129 = vmatpush1.bf16.msra.mxu0 0
    %130 = vmatprep.subr.bf16.mxu0 0
    %131 = vmatpush1.bf16.msra.mxu0 0
    %132 = vmatprep.subr.bf16.mxu0 0
    %133 = vmatpush1.bf16.msra.mxu0 0
    %134 = vmatprep.subr.bf16.mxu0 0
    %135 = vmatpush1.bf16.msra.mxu0 0
    %136 = vmatprep.subr.bf16.mxu0 0
    %137 = vmatpush1.bf16.msra.mxu0 0
    %138 = vmatprep.subr.bf16.mxu0 0
    %139 = vmatpush1.bf16.msra.mxu0 0
    %140 = vmatprep.mubr.bf16.mxu0 0
    %141 = vmatmul.mubr.bf16.gmra.mrb[0].mxu0 %v106
    %v142 = vpop.f32.mrb[0].mxu0
    %v143 = vadd.f32 %v77, %v142
    %v144 = vpop.f32.mrb[0].mxu0
    %v145 = vadd.f32 %v81, %v144
    %v146 = vpop.f32.mrb[0].mxu0
    %v147 = vpop.f32.mrb[0].mxu0
    %148 = vdwg.mxu0
    %v149 = vmax.f32 %v143, 0.0
    %v150 = vmax.f32 %v145, 0.0
    %v151 = vpack.c.bf16 %v149, %v149
    %v152 = vpack.c.bf16 %v150, %v150
    %v153 = vld [vmem:[#allocation7] sm:$0xff]
    %v154 = vld [vmem:[#allocation7 + $0x8] sm:$0xff]
    %v155 = vld [vmem:[#allocation7 + $0x10] sm:$0xff]
    %v156 = vld [vmem:[#allocation7 + $0x18] sm:$0xff]
    %v157 = vld [vmem:[#allocation7 + $0x20] sm:$0xff]
    %v158 = vld [vmem:[#allocation7 + $0x28] sm:$0xff]
    %v159 = vld [vmem:[#allocation7 + $0x30] sm:$0xff]
    %v160 = vld [vmem:[#allocation7 + $0x38] sm:$0xff]
    %v161 = vld [vmem:[#allocation7 + $0x40] sm:$0xff]
    %v162 = vld [vmem:[#allocation7 + $0x48] sm:$0xff]
    %v163 = vld [vmem:[#allocation7 + $0x50] sm:$0xff]
    %v164 = vld [vmem:[#allocation7 + $0x58] sm:$0xff]
    %v165 = vld [vmem:[#allocation7 + $0x60] sm:$0xff]
    %v166 = vld [vmem:[#allocation7 + $0x68] sm:$0xff]
    %v167 = vld [vmem:[#allocation7 + $0x70] sm:$0xff]
    %v168 = vld [vmem:[#allocation7 + $0x78] sm:$0xff]
    %v169 = vld [vmem:[#allocation7 + $0x80] sm:$0xff]
    %v170 = vld [vmem:[#allocation7 + $0x88] sm:$0xff]
    %v171 = vld [vmem:[#allocation7 + $0x90] sm:$0xff]
    %v172 = vld [vmem:[#allocation7 + $0x98] sm:$0xff]
    %v173 = vld [vmem:[#allocation7 + $0xa0] sm:$0xff]
    %v174 = vld [vmem:[#allocation7 + $0xa8] sm:$0xff]
    %v175 = vld [vmem:[#allocation7 + $0xb0] sm:$0xff]
    %v176 = vld [vmem:[#allocation7 + $0xb8] sm:$0xff]
    %v177 = vld [vmem:[#allocation7 + $0xc0] sm:$0xff]
    %v178 = vld [vmem:[#allocation7 + $0xc8] sm:$0xff]
    %v179 = vld [vmem:[#allocation7 + $0xd0] sm:$0xff]
    %v180 = vld [vmem:[#allocation7 + $0xd8] sm:$0xff]
    %v181 = vld [vmem:[#allocation7 + $0xe0] sm:$0xff]
    %v182 = vld [vmem:[#allocation7 + $0xe8] sm:$0xff]
    %v183 = vld [vmem:[#allocation7 + $0xf0] sm:$0xff]
    %v184 = vld [vmem:[#allocation7 + $0xf8] sm:$0xff]
    %v185 = vld [vmem:[%s4] sm:$0x3]
    %v187 = vlaneseq
    %v188 = vshrl.u32 %v187, 7
    %v189 = vsub.s32 0, %v188
    %v190 = vrot.slane %v185, %v189
    %v191 = vlaneseq
    %v192 = vshrl.u32 %v191, 7
    %v193 = vsub.s32 1, %v192
    %v194 = vrot.slane %v185, %v193
    %v229 = vunpack.c.l.b16 %v153
    %v230 = vunpack.c.h.b16 %v153
    %v231 = vunpack.c.l.b16 %v154
    %v232 = vunpack.c.h.b16 %v154
    %v233 = vunpack.c.l.b16 %v155
    %v234 = vunpack.c.h.b16 %v155
    %v235 = vunpack.c.l.b16 %v156
    %v236 = vunpack.c.h.b16 %v156
    %v237 = vunpack.c.l.b16 %v157
    %v238 = vunpack.c.h.b16 %v157
    %v239 = vunpack.c.l.b16 %v158
    %v240 = vunpack.c.h.b16 %v158
    %v241 = vunpack.c.l.b16 %v159
    %v242 = vunpack.c.h.b16 %v159
    %v243 = vunpack.c.l.b16 %v160
    %v244 = vunpack.c.h.b16 %v160
    %v245 = vunpack.c.l.b16 %v161
    %v246 = vunpack.c.h.b16 %v161
    %v247 = vunpack.c.l.b16 %v162
    %v248 = vunpack.c.h.b16 %v162
    %v249 = vunpack.c.l.b16 %v163
    %v250 = vunpack.c.h.b16 %v163
    %v251 = vunpack.c.l.b16 %v164
    %v252 = vunpack.c.h.b16 %v164
    %v253 = vunpack.c.l.b16 %v165
    %v254 = vunpack.c.h.b16 %v165
    %v255 = vunpack.c.l.b16 %v166
    %v256 = vunpack.c.h.b16 %v166
    %v257 = vunpack.c.l.b16 %v167
    %v258 = vunpack.c.h.b16 %v167
    %v259 = vunpack.c.l.b16 %v168
    %v260 = vunpack.c.h.b16 %v168
    %v261 = vunpack.c.l.b16 %v169
    %v262 = vunpack.c.h.b16 %v169
    %v263 = vunpack.c.l.b16 %v170
    %v264 = vunpack.c.h.b16 %v170
    %v265 = vunpack.c.l.b16 %v171
    %v266 = vunpack.c.h.b16 %v171
    %v267 = vunpack.c.l.b16 %v172
    %v268 = vunpack.c.h.b16 %v172
    %v269 = vunpack.c.l.b16 %v173
    %v270 = vunpack.c.h.b16 %v173
    %v271 = vunpack.c.l.b16 %v174
    %v272 = vunpack.c.h.b16 %v174
    %v273 = vunpack.c.l.b16 %v175
    %v274 = vunpack.c.h.b16 %v175
    %v275 = vunpack.c.l.b16 %v176
    %v276 = vunpack.c.h.b16 %v176
    %v277 = vunpack.c.l.b16 %v177
    %v278 = vunpack.c.h.b16 %v177
    %v279 = vunpack.c.l.b16 %v178
    %v280 = vunpack.c.h.b16 %v178
    %v281 = vunpack.c.l.b16 %v179
    %v282 = vunpack.c.h.b16 %v179
    %v283 = vunpack.c.l.b16 %v180
    %v284 = vunpack.c.h.b16 %v180
    %v285 = vunpack.c.l.b16 %v181
    %v286 = vunpack.c.h.b16 %v181
    %v287 = vunpack.c.l.b16 %v182
    %v288 = vunpack.c.h.b16 %v182
    %v289 = vunpack.c.l.b16 %v183
    %v290 = vunpack.c.h.b16 %v183
    %v291 = vunpack.c.l.b16 %v184
    %v292 = vunpack.c.h.b16 %v184
    %v293 = vpack.c.b16 %v231, %v229
    %v294 = vpack.c.b16 %v232, %v230
    %v295 = vpack.c.b16 %v235, %v233
    %v296 = vpack.c.b16 %v236, %v234
    %v297 = vpack.c.b16 %v239, %v237
    %v298 = vpack.c.b16 %v240, %v238
    %v299 = vpack.c.b16 %v243, %v241
    %v300 = vpack.c.b16 %v244, %v242
    %v301 = vpack.c.b16 %v247, %v245
    %v302 = vpack.c.b16 %v248, %v246
    %v303 = vpack.c.b16 %v251, %v249
    %v304 = vpack.c.b16 %v252, %v250
    %v305 = vpack.c.b16 %v255, %v253
    %v306 = vpack.c.b16 %v256, %v254
    %v307 = vpack.c.b16 %v259, %v257
    %v308 = vpack.c.b16 %v260, %v258
    %v309 = vpack.c.b16 %v263, %v261
    %v310 = vpack.c.b16 %v264, %v262
    %v311 = vpack.c.b16 %v267, %v265
    %v312 = vpack.c.b16 %v268, %v266
    %v313 = vpack.c.b16 %v271, %v269
    %v314 = vpack.c.b16 %v272, %v270
    %v315 = vpack.c.b16 %v275, %v273
    %v316 = vpack.c.b16 %v276, %v274
    %v317 = vpack.c.b16 %v279, %v277
    %v318 = vpack.c.b16 %v280, %v278
    %v319 = vpack.c.b16 %v283, %v281
    %v320 = vpack.c.b16 %v284, %v282
    %v321 = vpack.c.b16 %v287, %v285
    %v322 = vpack.c.b16 %v288, %v286
    %v323 = vpack.c.b16 %v291, %v289
    %v324 = vpack.c.b16 %v292, %v290
    %357 = vmatprep.subr.bf16.mxu0 %v294
    %358 = vmatpush1.bf16.msra.mxu0 %v293
    %359 = vmatprep.subr.bf16.mxu0 %v296
    %360 = vmatpush1.bf16.msra.mxu0 %v295
    %361 = vmatprep.subr.bf16.mxu0 %v298
    %362 = vmatpush1.bf16.msra.mxu0 %v297
    %363 = vmatprep.subr.bf16.mxu0 %v300
    %364 = vmatpush1.bf16.msra.mxu0 %v299
    %365 = vmatprep.subr.bf16.mxu0 %v302
    %366 = vmatpush1.bf16.msra.mxu0 %v301
    %367 = vmatprep.subr.bf16.mxu0 %v304
    %368 = vmatpush1.bf16.msra.mxu0 %v303
    %369 = vmatprep.subr.bf16.mxu0 %v306
    %370 = vmatpush1.bf16.msra.mxu0 %v305
    %371 = vmatprep.subr.bf16.mxu0 %v308
    %372 = vmatpush1.bf16.msra.mxu0 %v307
    %373 = vmatprep.subr.bf16.mxu0 %v310
    %374 = vmatpush1.bf16.msra.mxu0 %v309
    %375 = vmatprep.subr.bf16.mxu0 %v312
    %376 = vmatpush1.bf16.msra.mxu0 %v311
    %377 = vmatprep.subr.bf16.mxu0 %v314
    %378 = vmatpush1.bf16.msra.mxu0 %v313
    %379 = vmatprep.subr.bf16.mxu0 %v316
    %380 = vmatpush1.bf16.msra.mxu0 %v315
    %381 = vmatprep.subr.bf16.mxu0 %v318
    %382 = vmatpush1.bf16.msra.mxu0 %v317
    %383 = vmatprep.subr.bf16.mxu0 %v320
    %384 = vmatpush1.bf16.msra.mxu0 %v319
    %385 = vmatprep.subr.bf16.mxu0 %v322
    %386 = vmatpush1.bf16.msra.mxu0 %v321
    %387 = vmatprep.subr.bf16.mxu0 %v324
    %388 = vmatpush1.bf16.msra.mxu0 %v323
    %389 = vmatprep.mubr.bf16.mxu0 %v152
    %390 = vmatmul.mubr.bf16.gmra.mrb[0].mxu0 %v151
    %v391 = vpop.f32.mrb[0].mxu0
    %v392 = vadd.f32 %v190, %v391
    %v393 = vpop.f32.mrb[0].mxu0
    %v394 = vadd.f32 %v194, %v393
    %v395 = vpop.f32.mrb[0].mxu0
    %v396 = vpop.f32.mrb[0].mxu0
    %397 = vdwg.mxu0
    %v398 = vmax.f32 %v392, 0.0
    %v399 = vmax.f32 %v394, 0.0
    %v400 = vld [vmem:[%s5] sm:$0x3]
    %v402 = vlaneseq
    %v403 = vshrl.u32 %v402, 7
    %v404 = vsub.s32 0, %v403
    %v405 = vrot.slane %v400, %v404
    %v406 = vlaneseq
    %v407 = vshrl.u32 %v406, 7
    %v408 = vsub.s32 1, %v407
    %v409 = vrot.slane %v400, %v408
    %v412 = vmul.f32 %v398, %v405
    %v413 = vmul.f32 %v399, %v409
    %v414 = vadd.f32 %v412, %v413
    %415 = vadd.xlane.f32.xlu0 %v414
    %v416 = vpop.xlane.xlu0 %415
    %s417 = sld [smem:[#allocation2]]
    %v418 = vstv %s417
    %v419 = vadd.f32 %v416, %v418
    %v420 = vmax.f32 %v419, -2.0
    %v421 = vmin.f32 %v420, 2.0
    %vm422 = vcmask 7168
    %423 = vst.msk [vmem:[%s7] sm:$0xff] %vm422, %v421
    // Predicated region
    $region42: #{tpu_custom_call.1} parent=1 // pred_check
      _
    $region43: #{tpu_custom_call.1} parent=1 // pred_check_branch
      %425 = sbr.rel (0) target = $region45
    $region44: #{tpu_custom_call.1} parent=1 // pred_region
      _
    $region45: #{tpu_custom_call.1} parent=1 // pred_fallthru
      _
    // Predicated region
    $region46: #{tpu_custom_call.1} parent=1 // pred_check
      _
    $region47: #{tpu_custom_call.1} parent=1 // pred_check_branch
      %427 = sbr.rel (0) target = $region49
    $region48: #{tpu_custom_call.1} parent=1 // pred_region
      _
    $region49: #{tpu_custom_call.1} parent=1 // pred_fallthru
      _
    %428 = vsyncpa [#allocation4], 1
    %429 = vsyncpa [#allocation6], 1

</llo_original>
